<compile_context>
chip_gen: v5e
topology: v5e:2x2
jax: 0.10.0
libtpu: 0.0.40
codegen_flags: <defaults>
</compile_context>

<pallas_src>
import jax
import jax.numpy as jnp
from jax.experimental import pallas as pl
from jax.experimental.pallas import tpu as pltpu


def attention_kernel(x_ref, w_ref, b_ref, out_ref, attn_ref):
    # x_ref:    (TB, S, H)  batch tile
    # w_ref:    (1, H)      linear weight (out_features = 1), VMEM
    # b_ref:    (1,)        linear bias, SMEM scalar
    # out_ref:  (TB, 1, H)  weighted representation
    # attn_ref: (TB, 1, S)  attention weights (lane-dense on S)
    x = x_ref[...]                                      # (TB, S, H)
    w = w_ref[...]                                      # (1, H)
    bias = b_ref[0]                                     # scalar (SMEM)

    # Linear(H -> 1): scores[b, s] = sum_h x[b, s, h] * w[h] + bias
    scores = jnp.sum(x * w, axis=-1) + bias             # (TB, S)

    # softmax over the sequence axis (dim=1 of the original (B, S) tensor);
    # S sits on the lane axis, reductions go through the XLU.
    m = jnp.max(scores, axis=-1, keepdims=True)         # (TB, 1)
    e = jnp.exp(scores - m)                             # (TB, S)
    denom = jnp.sum(e, axis=-1, keepdims=True)          # (TB, 1)
    # approx=False keeps weights summing to 1.0 within the 1e-5 check.
    p = e * pl.reciprocal(denom, approx=False)          # (TB, S)

    attn_ref[...] = p[:, None, :].astype(attn_ref.dtype)    # (TB, 1, S)

    # bmm((1, S) @ (S, H)) per batch element: sum_s p[b, s] * x[b, s, :]
    weighted = jnp.sum(p[:, :, None] * x, axis=1)        # (TB, H)
    out_ref[...] = weighted[:, None, :].astype(out_ref.dtype)  # (TB, 1, H)


def _pick_tb(B, S, H, itemsize, target_bytes=1 << 20):
    """Batch-tile size: ~1 MiB of x per grid step, >=2 grid tiles when B>=2,
    and TB divides B so every block-spec dim is either full or evenly tiled."""
    per_batch = max(1, S * H * itemsize)
    tb = max(1, min(B, target_bytes // per_batch))
    if B >= 2:
        tb = min(tb, max(1, B // 2))   # keep >=2 tiles -> both TCs on v7x
    while tb > 1 and B % tb != 0:
        tb -= 1
    return tb


def attention_forward(x, w, b, *, tb=None):
    """x: (B, S, H) f32, w: (1, H), b: (1,).
    Returns (weighted (B, H), attention_weights (B, 1, S))."""
    B, S, H = x.shape
    if tb is None:
        tb = _pick_tb(B, S, H, x.dtype.itemsize)
    assert B % tb == 0
    grid = (B // tb,)

    weighted, attn = pl.pallas_call(
        attention_kernel,
        out_shape=(
            jax.ShapeDtypeStruct((B, 1, H), x.dtype),
            jax.ShapeDtypeStruct((B, 1, S), x.dtype),
        ),
        grid=grid,
        in_specs=[
            pl.BlockSpec((tb, S, H), lambda i: (i, 0, 0)),           # x tile
            pl.BlockSpec((1, H), lambda i: (0, 0)),                  # weight (reused)
            pl.BlockSpec(memory_space=pltpu.MemorySpace.SMEM),       # bias scalar
        ],
        out_specs=(
            pl.BlockSpec((tb, 1, H), lambda i: (i, 0, 0)),
            pl.BlockSpec((tb, 1, S), lambda i: (i, 0, 0)),           # lane-dense attn
        ),
        compiler_params=pltpu.CompilerParams(
            dimension_semantics=("parallel",),
            vmem_limit_bytes=32 * 1024 * 1024,   # safe on v5e/v6e/v7x
        ),
    )(x, w, b)

    # Match PyTorch return shapes: (B, H) and (B, 1, S).
    return weighted[:, 0, :], attn


def attention_reference(x, w, b):
    scores = jnp.einsum("bsh,h->bs", x, w[0]) + b[0]          # (B, S)
    p = jax.nn.softmax(scores, axis=1)                        # (B, S)
    weighted = jnp.einsum("bs,bsh->bh", p, x)                 # (B, H)
    return weighted, p[:, None, :]


if __name__ == "__main__":
    key = jax.random.PRNGKey(0)
    kx, kw, kb = jax.random.split(key, 3)

    B, S, H = 8, 8, 32  # batch, seq, hidden_size (small; exercises batch tiling)

    x = jax.random.normal(kx, (B, S, H), dtype=jnp.float32)
    # deterministic parameter init (shapes from nn.Linear(hidden_size, 1))
    bound = 1.0 / (H ** 0.5)
    w = jax.random.uniform(kw, (1, H), dtype=jnp.float32, minval=-bound, maxval=bound)
    b = jax.random.uniform(kb, (1,), dtype=jnp.float32, minval=-bound, maxval=bound)

    weighted, attn = attention_forward(x, w, b)
    jax.block_until_ready((weighted, attn))

    ref_weighted, ref_attn = attention_reference(x, w, b)
    assert weighted.shape == (B, H)
    assert attn.shape == (B, 1, S)
    assert jnp.allclose(weighted, ref_weighted, atol=1e-5, rtol=1e-5)
    assert jnp.allclose(attn, ref_attn, atol=1e-5, rtol=1e-5)

    print("KERNEL_OK")
</pallas_src>

<mosaic_0001>
module attributes {stable_mosaic.version = 11 : i64} {
  func.func @attention_kernel(%arg0: i32, %arg1: memref<4x8x32xf32, #tpu.memory_space<vmem>>, %arg2: memref<1x32xf32, #tpu.memory_space<vmem>>, %arg3: memref<1xf32, #tpu.memory_space<smem>>, %arg4: memref<4x1x32xf32, #tpu.memory_space<vmem>>, %arg5: memref<4x1x8xf32, #tpu.memory_space<vmem>>) attributes {dimension_semantics = [#tpu.dimension_semantics<parallel>], iteration_bounds = array<i64: 2>, scalar_prefetch = 0 : i64, scratch_operands = 0 : i64, tpu.core_type = #tpu.core_type<tc>, window_params = [{transform_indices = @transform_0, window_bounds = array<i64: 4, 8, 32>}, {pipeline_mode = #tpu.pipeline_mode<synchronous>, transform_indices = @transform_1, window_bounds = array<i64: 1, 32>}, {transform_indices = @transform_2, window_bounds = array<i64: 1>}, {transform_indices = @transform_3, window_bounds = array<i64: 4, 1, 32>}, {transform_indices = @transform_4, window_bounds = array<i64: 4, 1, 8>}]} {
    %c0 = arith.constant 0 : index
    %c0_0 = arith.constant 0 : index
    %c0_1 = arith.constant 0 : index
    %0 = vector.load %arg1[%c0, %c0_0, %c0_1] : memref<4x8x32xf32, #tpu.memory_space<vmem>>, vector<4x8x32xf32>
    %c0_2 = arith.constant 0 : index
    %c0_3 = arith.constant 0 : index
    %1 = vector.load %arg2[%c0_2, %c0_3] : memref<1x32xf32, #tpu.memory_space<vmem>>, vector<1x32xf32>
    %c0_4 = arith.constant 0 : index
    %2 = memref.load %arg3[%c0_4] : memref<1xf32, #tpu.memory_space<smem>>
    %3 = vector.shape_cast %1 : vector<1x32xf32> to vector<1x1x32xf32>
    %4 = vector.broadcast %3 : vector<1x1x32xf32> to vector<4x8x32xf32>
    %5 = arith.mulf %0, %4 : vector<4x8x32xf32>
    %cst = arith.constant dense<0.000000e+00> : vector<4x8xf32>
    %6 = vector.multi_reduction <add>, %5, %cst [2] : vector<4x8x32xf32> to vector<4x8xf32>
    %7 = vector.broadcast %2 : f32 to vector<4x8xf32>
    %8 = arith.addf %6, %7 : vector<4x8xf32>
    %cst_5 = arith.constant dense<0xFF800000> : vector<4xf32>
    %9 = vector.multi_reduction <maximumf>, %8, %cst_5 [1] : vector<4x8xf32> to vector<4xf32>
    %10 = vector.shape_cast %9 : vector<4xf32> to vector<4x1xf32>
    %11 = vector.broadcast %10 : vector<4x1xf32> to vector<4x8xf32>
    %12 = arith.subf %8, %11 : vector<4x8xf32>
    %13 = math.exp %12 : vector<4x8xf32>
    %cst_6 = arith.constant dense<0.000000e+00> : vector<4xf32>
    %14 = vector.multi_reduction <add>, %13, %cst_6 [1] : vector<4x8xf32> to vector<4xf32>
    %15 = vector.shape_cast %14 : vector<4xf32> to vector<4x1xf32>
    %16 = tpu.reciprocal %15 : vector<4x1xf32> -> vector<4x1xf32>
    %17 = vector.broadcast %16 : vector<4x1xf32> to vector<4x8xf32>
    %18 = arith.mulf %13, %17 : vector<4x8xf32>
    %19 = vector.shape_cast %18 : vector<4x8xf32> to vector<4x1x8xf32>
    %c0_7 = arith.constant 0 : index
    %c0_8 = arith.constant 0 : index
    %c0_9 = arith.constant 0 : index
    %20 = vector.load %arg5[%c0_7, %c0_8, %c0_9] : memref<4x1x8xf32, #tpu.memory_space<vmem>>, vector<4x1x8xf32>
    tpu.vector_store %arg5[%c0_7, %c0_8, %c0_9], %19 {strides = array<i32>} : memref<4x1x8xf32, #tpu.memory_space<vmem>>, vector<4x1x8xf32>,
    %21 = vector.shape_cast %18 : vector<4x8xf32> to vector<4x8x1xf32>
    %22 = vector.broadcast %21 : vector<4x8x1xf32> to vector<4x8x32xf32>
    %23 = arith.mulf %22, %0 : vector<4x8x32xf32>
    %cst_10 = arith.constant dense<0.000000e+00> : vector<4x32xf32>
    %24 = vector.multi_reduction <add>, %23, %cst_10 [1] : vector<4x8x32xf32> to vector<4x32xf32>
    %25 = vector.shape_cast %24 : vector<4x32xf32> to vector<4x1x32xf32>
    %c0_11 = arith.constant 0 : index
    %c0_12 = arith.constant 0 : index
    %c0_13 = arith.constant 0 : index
    %26 = vector.load %arg4[%c0_11, %c0_12, %c0_13] : memref<4x1x32xf32, #tpu.memory_space<vmem>>, vector<4x1x32xf32>
    tpu.vector_store %arg4[%c0_11, %c0_12, %c0_13], %25 {strides = array<i32>} : memref<4x1x32xf32, #tpu.memory_space<vmem>>, vector<4x1x32xf32>,
    return
  }
  func.func @transform_0(%arg0: i32) -> (i32, i32, i32) {
    %c0_i32 = arith.constant 0 : i32
    %c0_i32_0 = arith.constant 0 : i32
    %c0_i32_1 = arith.constant 0 : i32
    return %arg0, %c0_i32, %c0_i32_0 : i32, i32, i32
  }
  func.func @transform_1(%arg0: i32) -> (i32, i32) {
    %c0_i32 = arith.constant 0 : i32
    %c0_i32_0 = arith.constant 0 : i32
    %c0_i32_1 = arith.constant 0 : i32
    return %c0_i32, %c0_i32_0 : i32, i32
  }
  func.func @transform_2(%arg0: i32) -> i32 {
    %c0_i32 = arith.constant 0 : i32
    %c0_i32_0 = arith.constant 0 : i32
    return %c0_i32 : i32
  }
  func.func @transform_3(%arg0: i32) -> (i32, i32, i32) {
    %c0_i32 = arith.constant 0 : i32
    %c0_i32_0 = arith.constant 0 : i32
    %c0_i32_1 = arith.constant 0 : i32
    return %arg0, %c0_i32, %c0_i32_0 : i32, i32, i32
  }
  func.func @transform_4(%arg0: i32) -> (i32, i32, i32) {
    %c0_i32 = arith.constant 0 : i32
    %c0_i32_0 = arith.constant 0 : i32
    %c0_i32_1 = arith.constant 0 : i32
    return %arg0, %c0_i32, %c0_i32_0 : i32, i32, i32
  }
}

</mosaic_0001>

<llo_original>
// kernel: tpu_custom_call.1
$region0: #{tpu_custom_call.1}
  #allocation0 [shape = 'u32[]', space=smem, size = 0x4, offset = 0x4, fixed_abs, tag = 'smem constant byte address 0x4 - core index']
  #allocation1 [shape = 'u32[72,128]{1,0:T(1,128)}', space=vmem, size = 0x9000, scoped, tag = 'internal scratch']
  #allocation2 [shape = 'f32[1]{0:T(128)S(6)}', space=smem, size = 0x200, scoped, tag = 'scoped memory for tpu_custom_call.1']
  %s0 = inlined_call_operand.hbm [shape: f32[8,8,32], index: 0, kind: input, shape index: {}]
  %s1 = inlined_call_operand.vmem [shape: f32[1,32], index: 1, kind: input, shape index: {}]
  %s2 = inlined_call_operand.<no memory space> [shape: f32[1], index: 2, kind: input, shape index: {}]
  %s3 = inlined_call_operand.hbm [shape: f32[8,1,32], index: 3, kind: output, shape index: {0}]
  %s4 = inlined_call_operand.hbm [shape: f32[8,1,8], index: 4, kind: output, shape index: {1}]
  %5 = xla_tuple %s3, %s4
  %s6 = sld [smem:[#allocation0]]
  $region57: #{tpu_custom_call.1} parent=0
    _
  %s8 = ssub.s32 1, %s6
  %s9 = scalar_select 0, %s8, %s6
  %10 = sst [smem:[#allocation2]] %s2
  $region1: #{tpu_custom_call.1} parent=0
    #allocation3 [shape = 'u8[32768]{0}', space=vmem, size = 0x8000, scoped, tag = 'input window, operand 0']
    #allocation4 [shape = 's32[2]{0}', space=sflag, size = 0x8, scoped, tag = 'scoped memory for tpu_custom_call.1']
    #allocation5 [shape = 's32[2]{0}', space=sflag, size = 0x8, scoped, tag = 'scoped memory for tpu_custom_call.1']
    #allocation6 [shape = 'u8[4096]{0}', space=vmem, size = 0x1000, scoped, tag = 'output window, operand 0']
    #allocation7 [shape = 'u8[4096]{0}', space=vmem, size = 0x1000, scoped, tag = 'output window, operand 1']
    #allocation8 [shape = 's32[2]{0}', space=sflag, size = 0x8, scoped, tag = 'scoped memory for tpu_custom_call.1']
    %11 = vsyncpa [#allocation4], 0
    %s12 = scalar_lea.sflag [#allocation4], 1
    %13 = vsyncpa %s12, 0
    %14 = vsyncpa [#allocation5], 0
    %s15 = scalar_lea.sflag [#allocation5], 1
    %16 = vsyncpa %s15, 0
    %17 = vsyncpa [#allocation8], 0
    %s18 = scalar_lea.sflag [#allocation8], 1
    %19 = vsyncpa %s18, 0
    loop: start=0, step=1, limit=4
    $region2: #{tpu_custom_call.1} parent=1 // loop_pre_header
      _
    $region3: #{tpu_custom_call.1} parent=1 // loop_header
      %s21 = sphi 0, %s25
      %p22 = scmp.ge.s32.totalorder %s21, 4
      %s31 = sphi 0, %s33
      %s34 = sphi 0, %s31
      %s35 = sphi 0, %s34
      %s51 = sphi 0, %s35
      %s55 = sphi 0, %s55
      %s57 = sphi 0, %s55
      %s58 = sphi 0, %s57
      %s72 = sphi 0, %s58
      %s76 = sphi 0, %s76
      %s78 = sphi 0, %s76
      %s79 = sphi 0, %s78
      %s93 = sphi 0, %s79
      %s99 = sphi 0, %s101
      %s102 = sphi 0, %s99
      %s103 = sphi 0, %s102
      %s119 = sphi 0, %s103
      %s125 = sphi 0, %s127
      %s128 = sphi 0, %s125
      %s129 = sphi 0, %s128
      %s145 = sphi 0, %s129
    $region4: #{tpu_custom_call.1} parent=1 // loop_header_branch
      %24 = sbr.rel (%p22) target = $region8
    $region5: #{tpu_custom_call.1} parent=1 // loop_body
      %s26 = ssub.s32 %s21, 1
      %s27 = ssub.s32 %s21, 2
      %s28 = sadd.s32 %s21, 1
      %s29 = ssub.s32 %s21, %s28
      %p30 = scmp.eq.s32.totalorder %s29, 0
      %s32 = sadd.s32 %s31, 1
      %s33 = scalar_select %p30, %s31, %s32
      %p36 = pneg %p30
      %p37 = scmp.eq.s32.totalorder %s21, 1
      %p38 = por %p36, %p37
      %p39 = scmp.ne.s32.totalorder %s31, %s34
      %p40 = scmp.eq.s32.totalorder %s21, 0
      %p41 = por %p39, %p40
      %p42 = scmp.ne.s32.totalorder %s31, %s34
      %p43 = scmp.eq.s32.totalorder %s26, 1
      %p44 = por %p42, %p43
      %p45 = scmp.ne.s32.totalorder %s34, %s35
      %p46 = scmp.eq.s32.totalorder %s26, 0
      %p47 = por %p45, %p46
      %p48 = scmp.ne.s32.totalorder %s34, %s35
      %p49 = scmp.eq.s32.totalorder %s27, 1
      %p50 = por %p48, %p49
      %p52 = scmp.ne.s32.totalorder %s35, %s51
      %p53 = scmp.eq.s32.totalorder %s27, 0
      %p54 = por %p52, %p53
      %s56 = sadd.s32 %s55, 1
      %p59 = scmp.eq.s32.totalorder %s21, 1
      %p60 = scmp.ne.s32.totalorder %s55, %s57
      %p61 = scmp.eq.s32.totalorder %s21, 0
      %p62 = por %p60, %p61
      %p63 = scmp.ne.s32.totalorder %s55, %s57
      %p64 = scmp.eq.s32.totalorder %s26, 1
      %p65 = por %p63, %p64
      %p66 = scmp.ne.s32.totalorder %s57, %s58
      %p67 = scmp.eq.s32.totalorder %s26, 0
      %p68 = por %p66, %p67
      %p69 = scmp.ne.s32.totalorder %s57, %s58
      %p70 = scmp.eq.s32.totalorder %s27, 1
      %p71 = por %p69, %p70
      %p73 = scmp.ne.s32.totalorder %s58, %s72
      %p74 = scmp.eq.s32.totalorder %s27, 0
      %p75 = por %p73, %p74
      %s77 = sadd.s32 %s76, 1
      %p80 = scmp.eq.s32.totalorder %s21, 1
      %p81 = scmp.ne.s32.totalorder %s76, %s78
      %p82 = scmp.eq.s32.totalorder %s21, 0
      %p83 = por %p81, %p82
      %p84 = scmp.ne.s32.totalorder %s76, %s78
      %p85 = scmp.eq.s32.totalorder %s26, 1
      %p86 = por %p84, %p85
      %p87 = scmp.ne.s32.totalorder %s78, %s79
      %p88 = scmp.eq.s32.totalorder %s26, 0
      %p89 = por %p87, %p88
      %p90 = scmp.ne.s32.totalorder %s78, %s79
      %p91 = scmp.eq.s32.totalorder %s27, 1
      %p92 = por %p90, %p91
      %p94 = scmp.ne.s32.totalorder %s79, %s93
      %p95 = scmp.eq.s32.totalorder %s27, 0
      %p96 = por %p94, %p95
      %s97 = ssub.s32 %s21, %s28
      %p98 = scmp.eq.s32.totalorder %s97, 0
      %s100 = sadd.s32 %s99, 1
      %s101 = scalar_select %p98, %s99, %s100
      %p104 = pneg %p98
      %p105 = scmp.eq.s32.totalorder %s21, 1
      %p106 = por %p104, %p105
      %p107 = scmp.ne.s32.totalorder %s99, %s102
      %p108 = scmp.eq.s32.totalorder %s21, 0
      %p109 = por %p107, %p108
      %p110 = scmp.ne.s32.totalorder %s99, %s102
      %p111 = scmp.eq.s32.totalorder %s26, 1
      %p112 = por %p110, %p111
      %p113 = scmp.ne.s32.totalorder %s102, %s103
      %p114 = scmp.eq.s32.totalorder %s26, 0
      %p115 = por %p113, %p114
      %p116 = scmp.ne.s32.totalorder %s102, %s103
      %p117 = scmp.eq.s32.totalorder %s27, 1
      %p118 = por %p116, %p117
      %p120 = scmp.ne.s32.totalorder %s103, %s119
      %p121 = scmp.eq.s32.totalorder %s27, 0
      %p122 = por %p120, %p121
      %s123 = ssub.s32 %s21, %s28
      %p124 = scmp.eq.s32.totalorder %s123, 0
      %s126 = sadd.s32 %s125, 1
      %s127 = scalar_select %p124, %s125, %s126
      %p130 = pneg %p124
      %p131 = scmp.eq.s32.totalorder %s21, 1
      %p132 = por %p130, %p131
      %p133 = scmp.ne.s32.totalorder %s125, %s128
      %p134 = scmp.eq.s32.totalorder %s21, 0
      %p135 = por %p133, %p134
      %p136 = scmp.ne.s32.totalorder %s125, %s128
      %p137 = scmp.eq.s32.totalorder %s26, 1
      %p138 = por %p136, %p137
      %p139 = scmp.ne.s32.totalorder %s128, %s129
      %p140 = scmp.eq.s32.totalorder %s26, 0
      %p141 = por %p139, %p140
      %p142 = scmp.ne.s32.totalorder %s128, %s129
      %p143 = scmp.eq.s32.totalorder %s27, 1
      %p144 = por %p142, %p143
      %p146 = scmp.ne.s32.totalorder %s129, %s145
      %p147 = scmp.eq.s32.totalorder %s27, 0
      %p148 = por %p146, %p147
      %p149 = scmp.le.s32.totalorder 1, %s21
      %p150 = scmp.lt.s32.totalorder %s21, 3
      %p151 = pnand %p149, %p150
      %p152 = pneg %p151
      // Predicated region
      $region9: #{tpu_custom_call.1} parent=5 // pred_check
        _
      $region10: #{tpu_custom_call.1} parent=5 // pred_check_branch
        %154 = sbr.rel (%p151) target = $region12
      $region11: #{tpu_custom_call.1} parent=5 // pred_region
        %s155 = ssub.s32 %s21, 1
        // Predicated region
        $region13: #{tpu_custom_call.1} parent=11 // pred_check
          %p156 = pneg %p68
        $region14: #{tpu_custom_call.1} parent=11 // pred_check_branch
          %158 = sbr.rel (%p156) target = $region16
        $region15: #{tpu_custom_call.1} parent=11 // pred_region
          _
        $region16: #{tpu_custom_call.1} parent=11 // pred_fallthru
          _
        // Predicated region
        $region17: #{tpu_custom_call.1} parent=11 // pred_check
          %p159 = pneg %p89
        $region18: #{tpu_custom_call.1} parent=11 // pred_check_branch
          %161 = sbr.rel (%p159) target = $region20
        $region19: #{tpu_custom_call.1} parent=11 // pred_region
          _
        $region20: #{tpu_custom_call.1} parent=11 // pred_fallthru
          _
      $region12: #{tpu_custom_call.1} parent=5 // pred_fallthru
        _
      %p162 = scmp.lt.s32.totalorder %s21, 2
      // Predicated region
      $region21: #{tpu_custom_call.1} parent=5 // pred_check
        %p163 = pneg %p162
      $region22: #{tpu_custom_call.1} parent=5 // pred_check_branch
        %165 = sbr.rel (%p163) target = $region24
      $region23: #{tpu_custom_call.1} parent=5 // pred_region
        // Predicated region
        $region25: #{tpu_custom_call.1} parent=23 // pred_check
          %p166 = pneg %p41
        $region26: #{tpu_custom_call.1} parent=23 // pred_check_branch
          %168 = sbr.rel (%p166) target = $region28
        $region27: #{tpu_custom_call.1} parent=23 // pred_region
          %s169 = sand.u32 %s31, 1
          %s170 = scalar_lea.sflag [#allocation4], %s169
          %s171 = sand.u32 %s31, 1
          %s172 = smul.addr %s171, 32
          %s173 = scalar_lea.vmem [#allocation3], %s172
          %s174 = smul.u32 4, %s21
          %176 = vsyncadd %s170, 0
          %s177 = smul.addr %s174, 8
          %s178 = scalar_lea.hbm %s0, %s177
          %s179 = sshll.u32 %s178, 4
          %s180 = int_to_ptr.hbm [resolvable:$true] %s179
          %s181 = sshll.u32 %s173, 4
          %s182 = int_to_ptr.vmem [resolvable:$true] %s181
          %187 = dma.hbm_to_vmem [thread:$0]  %s180, 512, %s182, %s170, 128, 128, 8
        $region28: #{tpu_custom_call.1} parent=23 // pred_fallthru
          _
      $region24: #{tpu_custom_call.1} parent=5 // pred_fallthru
        _
      %p188 = scmp.le.s32.totalorder 1, %s21
      %p189 = scmp.lt.s32.totalorder %s21, 3
      %p190 = pnand %p188, %p189
      %p191 = pneg %p190
      // Predicated region
      $region29: #{tpu_custom_call.1} parent=5 // pred_check
        _
      $region30: #{tpu_custom_call.1} parent=5 // pred_check_branch
        %193 = sbr.rel (%p190) target = $region32
      $region31: #{tpu_custom_call.1} parent=5 // pred_region
        %s194 = ssub.s32 %s21, 1
        %s195 = sand.u32 %s34, 1
        %s196 = scalar_lea.sflag [#allocation4], %s195
        %s197 = sand.u32 %s34, 1
        %s198 = smul.addr %s197, 32
        %s199 = scalar_lea.vmem [#allocation3], %s198
        // Predicated region
        $region33: #{tpu_custom_call.1} parent=31 // pred_check
          %p200 = pneg %p47
        $region34: #{tpu_custom_call.1} parent=31 // pred_check_branch
          %202 = sbr.rel (%p200) target = $region36
        $region35: #{tpu_custom_call.1} parent=31 // pred_region
          %204 = dma.done %s196, 512
        $region36: #{tpu_custom_call.1} parent=31 // pred_fallthru
          _
        %s205 = sand.u32 %s34, 1
        %s206 = scalar_lea.sflag [#allocation4], %s205
        %s207 = sand.u32 %s34, 1
        %s208 = smul.addr %s207, 32
        %s209 = scalar_lea.vmem [#allocation3], %s208
        %p210 = pneg %p47
        %p211 = pneg %p44
        %p212 = pneg %p68
        %p213 = pneg %p65
        %p214 = pneg %p89
        %p215 = pneg %p86
        %p216 = pneg %p115
        %p217 = pneg %p112
        %s218 = sand.u32 %s102, 1
        %s219 = scalar_lea.sflag [#allocation5], %s218
        %s220 = sand.u32 %s102, 1
        %s221 = smul.addr %s220, 4
        %s222 = scalar_lea.vmem [#allocation6], %s221
        %p223 = pneg %p141
        %p224 = pneg %p138
        %s225 = sand.u32 %s128, 1
        %s226 = scalar_lea.sflag [#allocation8], %s225
        %s227 = sand.u32 %s128, 1
        %s228 = smul.addr %s227, 4
        %s229 = scalar_lea.vmem [#allocation7], %s228
        %s230 = smul.u32 4, %s26
        %s231 = smul.u32 4, %s26
        %s232 = smul.u32 4, %s26
        %v233 = vld [vmem:[%s199] sm:$0xff]
        %v234 = vld [vmem:[%s199 + $0x8] sm:$0xff]
        %v235 = vld [vmem:[%s199 + $0x10] sm:$0xff]
        %v236 = vld [vmem:[%s199 + $0x18] sm:$0xff]
        %v237 = vld [vmem:[%s1] sm:$0x1]
        %s238 = sld [smem:[#allocation2]]
        %v240 = vperm.slane %v237, 0
        %v242 = vmul.f32 %v233, %v240
        %v243 = vmul.f32 %v234, %v240
        %v244 = vmul.f32 %v235, %v240
        %v245 = vmul.f32 %v236, %v240
        %vm246 = vcmask 261120
        %v247 = vsel %vm246, %v242, 0.0
        %248 = vadd.xlane.f32.xlu0 %v247
        %v249 = vpop.xlane.xlu0 %248
        %v250 = vsel %vm246, %v243, 0.0
        %251 = vadd.xlane.f32.xlu0 %v250
        %v252 = vpop.xlane.xlu0 %251
        %v253 = vsel %vm246, %v244, 0.0
        %254 = vadd.xlane.f32.xlu0 %v253
        %v255 = vpop.xlane.xlu0 %254
        %v256 = vsel %vm246, %v245, 0.0
        %257 = vadd.xlane.f32.xlu0 %v256
        %v258 = vpop.xlane.xlu0 %257
        %v259 = vstv %s238
        %v260 = vadd.f32 %v249, %v259
        %v261 = vadd.f32 %v252, %v259
        %v262 = vadd.f32 %v255, %v259
        %v263 = vadd.f32 %v258, %v259
        %v268 = vlaneseq
        %v269 = vand.u32 %v268, 127
        %v270 = vperm.slane %v260, %v269
        %v271 = vperm.slane %v261, %v269
        %v272 = vperm.slane %v262, %v269
        %v273 = vperm.slane %v263, %v269
        %vm274 = vcmask 1041409
        %v275 = vsel %vm274, %v271, %v270
        %vm276 = vcmask 1042434
        %v277 = vsel %vm276, %v272, %v275
        %vm278 = vcmask 1043459
        %v279 = vsel %vm278, %v273, %v277
        %vm281 = vcmask 60416
        %v282 = vsel %vm281, %v279, -inf
        %283 = vmax.xlane.f32.xlu0 %v282
        %v284 = vpop.xlane.xlu0 %283
        %v286 = vperm.slane %v284, 0
        %v287 = vperm.slane %v284, 1
        %v288 = vperm.slane %v284, 2
        %v289 = vperm.slane %v284, 3
        %v294 = vsub.f32 %v260, %v286
        %v295 = vsub.f32 %v261, %v287
        %v296 = vsub.f32 %v262, %v288
        %v297 = vsub.f32 %v263, %v289
        %v298 = vmul.f32 %v294, 1.442695
        %v299 = vpow.pop %v298
        %v300 = vmul.f32 %v295, 1.442695
        %v301 = vpow.pop %v300
        %v302 = vmul.f32 %v296, 1.442695
        %v303 = vpow.pop %v302
        %v304 = vmul.f32 %v297, 1.442695
        %v305 = vpow.pop %v304
        %310 = vset.pattern.permute.xlu0 0
        %311 = vperm.xlu0 %310, %v299
        %v312 = vpop.permute.xlu0 %311
        %313 = vset.pattern.permute.xlu0 0
        %314 = vperm.xlu0 %313, %v301
        %v315 = vpop.permute.xlu0 %314
        %316 = vset.pattern.permute.xlu0 0
        %317 = vperm.xlu0 %316, %v303
        %v318 = vpop.permute.xlu0 %317
        %319 = vset.pattern.permute.xlu0 0
        %320 = vperm.xlu0 %319, %v305
        %v321 = vpop.permute.xlu0 %320
        %v322 = vperm.slane %v312, %v269
        %v323 = vperm.slane %v315, %v269
        %v324 = vperm.slane %v318, %v269
        %v325 = vperm.slane %v321, %v269
        %v326 = vsel %vm274, %v323, %v322
        %v327 = vsel %vm276, %v324, %v326
        %v328 = vsel %vm278, %v325, %v327
        %v330 = vsel %vm281, %v328, 0.0
        %331 = vadd.xlane.f32.xlu0 %v330
        %v332 = vpop.xlane.xlu0 %331
        %v333 = vrcp.pop %v332
        %v334 = vmul.f32 %v332, %v333
        %v335 = vsub.f32 1.0, %v334
        %v336 = vmul.f32 %v333, %v335
        %v337 = vadd.f32 %v333, %v336
        %vm338 = vweird.f32 %v332
        %vm339 = vweird.f32 %v333
        %vm340 = vmor %vm338, %vm339
        %v341 = vsel %vm340, %v333, %v337
        %v342 = vand.u32 2147483647, %v332
        %vm343 = vcmp.eq.f32.partialorder %v342, 8.507059e+37
        %v344 = vand.u32 %v332, 2147483648
        %v345 = vor.u32 1.1754944e-38, %v344
        %v346 = vsel %vm343, %v345, %v341
        %v348 = vperm.slane %v346, 0
        %v349 = vperm.slane %v346, 1
        %v350 = vperm.slane %v346, 2
        %v351 = vperm.slane %v346, 3
        %v356 = vmul.f32 %v299, %v348
        %v357 = vmul.f32 %v301, %v349
        %v358 = vmul.f32 %v303, %v350
        %v359 = vmul.f32 %v305, %v351
        %364 = vset.pattern.permute.xlu0 0
        %365 = vperm.xlu0 %364, %v356
        %v366 = vpop.permute.xlu0 %365
        %367 = vset.pattern.permute.xlu0 0
        %368 = vperm.xlu0 %367, %v357
        %v369 = vpop.permute.xlu0 %368
        %370 = vset.pattern.permute.xlu0 0
        %371 = vperm.xlu0 %370, %v358
        %v372 = vpop.permute.xlu0 %371
        %373 = vset.pattern.permute.xlu0 0
        %374 = vperm.xlu0 %373, %v359
        %v375 = vpop.permute.xlu0 %374
        %v376 = vperm.slane %v366, %v269
        %v377 = vperm.slane %v369, %v269
        %v378 = vperm.slane %v372, %v269
        %v379 = vperm.slane %v375, %v269
        %vm384 = vcmask 57344
        %385 = vst.msk [vmem:[%s229] sm:$0x1] %vm384, %v376
        %386 = vst.msk [vmem:[%s229 + $0x1] sm:$0x1] %vm384, %v377
        %387 = vst.msk [vmem:[%s229 + $0x2] sm:$0x1] %vm384, %v378
        %388 = vst.msk [vmem:[%s229 + $0x3] sm:$0x1] %vm384, %v379
        %v393 = vmul.f32 %v366, %v233
        %v394 = vmul.f32 %v369, %v234
        %v395 = vmul.f32 %v372, %v235
        %v396 = vmul.f32 %v375, %v236
        %v397 = vsel %vm246, %v393, 0.0
        %v398 = vrot.slane %v397, 4
        %v399 = vadd.f32 %v397, %v398
        %v400 = vrot.slane %v399, 2
        %v401 = vadd.f32 %v399, %v400
        %v402 = vrot.slane %v401, 1
        %v403 = vadd.f32 %v401, %v402
        %v404 = vsel %vm246, %v394, 0.0
        %v405 = vrot.slane %v404, 4
        %v406 = vadd.f32 %v404, %v405
        %v407 = vrot.slane %v406, 2
        %v408 = vadd.f32 %v406, %v407
        %v409 = vrot.slane %v408, 1
        %v410 = vadd.f32 %v408, %v409
        %v411 = vsel %vm246, %v395, 0.0
        %v412 = vrot.slane %v411, 4
        %v413 = vadd.f32 %v411, %v412
        %v414 = vrot.slane %v413, 2
        %v415 = vadd.f32 %v413, %v414
        %v416 = vrot.slane %v415, 1
        %v417 = vadd.f32 %v415, %v416
        %v418 = vsel %vm246, %v396, 0.0
        %v419 = vrot.slane %v418, 4
        %v420 = vadd.f32 %v418, %v419
        %v421 = vrot.slane %v420, 2
        %v422 = vadd.f32 %v420, %v421
        %v423 = vrot.slane %v422, 1
        %v424 = vadd.f32 %v422, %v423
        %vm425 = vcmask 253952
        %426 = vst.msk [vmem:[%s222] sm:$0x1] %vm425, %v403
        %427 = vst.msk [vmem:[%s222 + $0x1] sm:$0x1] %vm425, %v410
        %428 = vst.msk [vmem:[%s222 + $0x2] sm:$0x1] %vm425, %v417
        %429 = vst.msk [vmem:[%s222 + $0x3] sm:$0x1] %vm425, %v424
        %s430 = sand.u32 %s102, 1
        %s431 = scalar_lea.sflag [#allocation5], %s430
        %s432 = sand.u32 %s102, 1
        %s433 = smul.addr %s432, 4
        %s434 = scalar_lea.vmem [#allocation6], %s433
        %s435 = sand.u32 %s128, 1
        %s436 = scalar_lea.sflag [#allocation8], %s435
        %s437 = sand.u32 %s128, 1
        %s438 = smul.addr %s437, 4
        %s439 = scalar_lea.vmem [#allocation7], %s438
        // Predicated region
        $region37: #{tpu_custom_call.1} parent=31 // pred_check
          %p440 = pneg %p112
        $region38: #{tpu_custom_call.1} parent=31 // pred_check_branch
          %442 = sbr.rel (%p440) target = $region40
        $region39: #{tpu_custom_call.1} parent=31 // pred_region
          %s443 = smul.u32 4, %s26
          %445 = vsyncadd %s431, 0
          %s446 = scalar_lea.hbm %s3, %s443
          %s447 = sshll.u32 %s434, 4
          %s448 = int_to_ptr.vmem [resolvable:$true] %s447
          %s449 = sshll.u32 %s446, 4
          %s450 = int_to_ptr.hbm [resolvable:$true] %s449
          %455 = dma.vmem_to_hbm [thread:$0]  %s448, 64, %s450, %s431, 16, 16, 1
        $region40: #{tpu_custom_call.1} parent=31 // pred_fallthru
          _
        // Predicated region
        $region41: #{tpu_custom_call.1} parent=31 // pred_check
          %p456 = pneg %p138
        $region42: #{tpu_custom_call.1} parent=31 // pred_check_branch
          %458 = sbr.rel (%p456) target = $region44
        $region43: #{tpu_custom_call.1} parent=31 // pred_region
          %s459 = smul.u32 4, %s26
          %461 = vsyncadd %s436, 0
          %s462 = scalar_lea.hbm %s4, %s459
          %s463 = sshll.u32 %s439, 4
          %s464 = int_to_ptr.vmem [resolvable:$true] %s463
          %s465 = sshll.u32 %s462, 4
          %s466 = int_to_ptr.hbm [resolvable:$true] %s465
          %471 = dma.vmem_to_hbm [thread:$0]  %s464, 64, %s466, %s436, 16, 16, 1
        $region44: #{tpu_custom_call.1} parent=31 // pred_fallthru
          _
      $region32: #{tpu_custom_call.1} parent=5 // pred_fallthru
        _
      %p472 = scmp.le.s32.totalorder 2, %s21
      // Predicated region
      $region45: #{tpu_custom_call.1} parent=5 // pred_check
        %p473 = pneg %p472
      $region46: #{tpu_custom_call.1} parent=5 // pred_check_branch
        %475 = sbr.rel (%p473) target = $region48
      $region47: #{tpu_custom_call.1} parent=5 // pred_region
        %s476 = ssub.s32 %s21, 2
        // Predicated region
        $region49: #{tpu_custom_call.1} parent=47 // pred_check
          %p477 = pneg %p118
        $region50: #{tpu_custom_call.1} parent=47 // pred_check_branch
          %479 = sbr.rel (%p477) target = $region52
        $region51: #{tpu_custom_call.1} parent=47 // pred_region
          %s480 = sand.u32 %s103, 1
          %s481 = scalar_lea.sflag [#allocation5], %s480
          %s482 = sand.u32 %s103, 1
          %s483 = smul.addr %s482, 4
          %s484 = scalar_lea.vmem [#allocation6], %s483
          %486 = dma.done %s481, 64
        $region52: #{tpu_custom_call.1} parent=47 // pred_fallthru
          _
        // Predicated region
        $region53: #{tpu_custom_call.1} parent=47 // pred_check
          %p487 = pneg %p144
        $region54: #{tpu_custom_call.1} parent=47 // pred_check_branch
          %489 = sbr.rel (%p487) target = $region56
        $region55: #{tpu_custom_call.1} parent=47 // pred_region
          %s490 = sand.u32 %s129, 1
          %s491 = scalar_lea.sflag [#allocation8], %s490
          %s492 = sand.u32 %s129, 1
          %s493 = smul.addr %s492, 4
          %s494 = scalar_lea.vmem [#allocation7], %s493
          %496 = dma.done %s491, 64
        $region56: #{tpu_custom_call.1} parent=47 // pred_fallthru
          _
      $region48: #{tpu_custom_call.1} parent=5 // pred_fallthru
        _
    $region6: #{tpu_custom_call.1} parent=1 // loop_footer
      %s25 = sadd.s32 1, %s21
    $region7: #{tpu_custom_call.1} parent=1 // loop_footer_branch
      %20 = sbr.rel target = $region3
    $region8: #{tpu_custom_call.1} parent=1 // loop_exit
      _
    %497 = vsyncpa [#allocation4], 1
    %s498 = scalar_lea.sflag [#allocation4], 1
    %499 = vsyncpa %s498, 1
    %500 = vsyncpa [#allocation5], 1
    %s501 = scalar_lea.sflag [#allocation5], 1
    %502 = vsyncpa %s501, 1
    %503 = vsyncpa [#allocation8], 1
    %s504 = scalar_lea.sflag [#allocation8], 1
    %505 = vsyncpa %s504, 1

</llo_original>
